<compile_context>
chip_gen: v7x
topology: tpu7x:2x2x1
jax: 0.10.0
libtpu: 0.0.40
codegen_flags: <defaults>
</compile_context>

<pallas_src>
import jax
import jax.numpy as jnp
from jax.experimental import pallas as pl
from jax.experimental.pallas import tpu as pltpu


def _round_up(x, m):
    return ((x + m - 1) // m) * m


def rnn_net_2_kernel(
    x_ref,                      # (bt, K_in) f32: fused [x_state | x_input] rows
    wsi_ref, bsi_ref,           # fused branch: (K_in, 128) block-diag W, (1, 128) f32 bias
    w0_ref, b0_ref,             # layer_0: (128, 256), (1, 256)
    w1_ref, b1_ref,             # layer_1: (256, 128), (1, 128)
    w2_ref, b2_ref,             # layer_2: (128, 64),  (1, 64)
    w3_ref, b3_ref,             # layer_3: (64, out_dim), (1, out_dim)
    out_ref,                    # (bt, out_dim) f32
):
    cdt = wsi_ref.dtype         # MXU operand dtype (bf16 default); accumulation is always f32

    # Single in-VMEM cast of the activations (wrapper keeps x in f32).
    x = x_ref[...].astype(cdt)

    # fused branches: relu([xs|xi] @ blockdiag(Ws, Wi) + [bs|bi]) -> (bt, 128)
    h = jnp.dot(x, wsi_ref[...], preferred_element_type=jnp.float32) + bsi_ref[...]
    h = jnp.maximum(h, 0.0)

    h = jnp.dot(h.astype(cdt), w0_ref[...], preferred_element_type=jnp.float32) + b0_ref[...]
    h = jnp.maximum(h, 0.0)                                   # (bt, 256)

    h = jnp.dot(h.astype(cdt), w1_ref[...], preferred_element_type=jnp.float32) + b1_ref[...]
    h = jnp.maximum(h, 0.0)                                   # (bt, 128)

    h = jnp.dot(h.astype(cdt), w2_ref[...], preferred_element_type=jnp.float32) + b2_ref[...]
    h = jnp.maximum(h, 0.0)                                   # (bt, 64)

    h = jnp.dot(h.astype(cdt), w3_ref[...], preferred_element_type=jnp.float32) + b3_ref[...]
    out_ref[...] = jnp.tanh(h)                                # (bt, out_dim), f32 epilogue
    # TODO(synk): if the masked (out_dim=3) store ever shows in the store slot,
    # pad the last layer to 128 lanes and slice in the wrapper (low priority).


def prepare_params(params, compute_dtype=jnp.bfloat16):
    """One-time weight fusion + MXU-dtype cast (hoisted out of the per-call path)."""
    f32 = jnp.float32
    cdt = jnp.dtype(compute_dtype)
    state_dim = params["ws"].shape[0]
    input_dim = params["wi"].shape[0]
    K_in = state_dim + input_dim

    # block-diagonal first layer: [xs|xi] @ blockdiag(Ws, Wi) == [xs@Ws | xi@Wi]
    w_si = jnp.zeros((K_in, 128), f32)
    w_si = w_si.at[:state_dim, :64].set(params["ws"])
    w_si = w_si.at[state_dim:, 64:].set(params["wi"])
    b_si = jnp.concatenate([params["bs"], params["bi"]], axis=1)       # (1, 128)

    return dict(
        w_si=w_si.astype(cdt), b_si=b_si,
        w0=params["w0"].astype(cdt), b0=params["b0"],
        w1=params["w1"].astype(cdt), b1=params["b1"],
        w2=params["w2"].astype(cdt), b2=params["b2"],
        w3=params["w3"].astype(cdt), b3=params["b3"],
    )


def _choose_batch_tile(B, batch_tile, align, *, max_tile=2048, target_tiles=8,
                       min_tile=256):
    """Pick a packing-aligned batch tile.

    - large tiles (256..2048 rows) amortize the ~0.35 us per-grid-step overhead;
    - when there is enough work we keep >= 2 tiles so the "parallel" batch axis
      can be split across v7x's two TensorCores;
    - bt is always a multiple of `align` (8 rows f32 / 16 rows bf16 / 32 int8),
      so blocks never violate the (8,128) rule even for odd user batch_tile.
    """
    Bp_min = _round_up(max(B, 1), align)
    if batch_tile is not None:
        bt = _round_up(min(max(batch_tile, 1), Bp_min), align)
    else:
        bt_target = min(max_tile, max(min_tile, pl.cdiv(Bp_min, target_tiles)))
        n_tiles = max(1, pl.cdiv(Bp_min, bt_target))
        bt = _round_up(pl.cdiv(Bp_min, n_tiles), align)
    Bp = _round_up(Bp_min, bt)
    return bt, Bp


def rnn_net_2_forward(x_state, x_input, prepared, *, batch_tile=None):
    """Forward pass of RNN_net_2 as a single batch-tiled Pallas call.

    `prepared` comes from prepare_params() (weights fused and cast once, not per
    call).  The MXU operand dtype is the prepared weight dtype (bf16 default);
    accumulation, bias-add, ReLU and tanh are always f32.
    """
    f32 = jnp.float32
    B, state_dim = x_state.shape
    input_dim = x_input.shape[1]
    K_in = state_dim + input_dim
    w_si = prepared["w_si"]
    out_dim = prepared["w3"].shape[1]
    cdt = jnp.dtype(w_si.dtype)
    # sub-32-bit MXU operands pack 2/4 rows per sublane -> align the batch tile.
    align = {4: 8, 2: 16, 1: 32}.get(cdt.itemsize, 8)

    bt, Bp = _choose_batch_tile(B, batch_tile, align)
    grid = (Bp // bt,)

    # At most two light wrapper passes over x: lane-concat the two branch inputs
    # (kept in f32 -- the bf16 cast happens once inside the kernel), and append a
    # zeros block only when row padding is needed.  NOTE: padded rows run through
    # bias+tanh and hold garbage in out_padded; they are sliced off below and
    # must never be reused.
    x_si = jnp.concatenate([x_state, x_input], axis=1).astype(f32)     # (B, K_in)
    if Bp != B:
        x_si = jnp.concatenate([x_si, jnp.zeros((Bp - B, K_in), f32)], axis=0)

    operands = (
        x_si,
        w_si, prepared["b_si"],
        prepared["w0"], prepared["b0"],
        prepared["w1"], prepared["b1"],
        prepared["w2"], prepared["b2"],
        prepared["w3"], prepared["b3"],
    )

    # Weights/biases: constant index_map -> single block, VMEM-resident across
    # every batch tile.
    const = lambda i: (0, 0)
    in_specs = [
        pl.BlockSpec((bt, K_in), lambda i: (i, 0)),
        pl.BlockSpec((K_in, 128), const),   pl.BlockSpec((1, 128), const),
        pl.BlockSpec((128, 256), const),    pl.BlockSpec((1, 256), const),
        pl.BlockSpec((256, 128), const),    pl.BlockSpec((1, 128), const),
        pl.BlockSpec((128, 64), const),     pl.BlockSpec((1, 64), const),
        pl.BlockSpec((64, out_dim), const), pl.BlockSpec((1, out_dim), const),
    ]
    out_spec = pl.BlockSpec((bt, out_dim), lambda i: (i, 0))

    flops = 2 * Bp * (K_in * 128 + 128 * 256 + 256 * 128 + 128 * 64 + 64 * out_dim)
    bytes_accessed = sum(int(o.size) * o.dtype.itemsize for o in operands) \
                     + Bp * out_dim * 4
    cost = pl.CostEstimate(flops=flops, transcendentals=Bp * out_dim,
                           bytes_accessed=bytes_accessed)

    out_padded = pl.pallas_call(
        rnn_net_2_kernel,
        out_shape=jax.ShapeDtypeStruct((Bp, out_dim), f32),
        grid=grid,
        in_specs=in_specs,
        out_specs=out_spec,
        compiler_params=pltpu.CompilerParams(
            dimension_semantics=("parallel",),       # batch tiles split across TCs (v7x)
            vmem_limit_bytes=48 * 1024 * 1024),      # 2K-row tiles fit; <= v7x 64 MiB
        cost_estimate=cost,
    )(*operands)

    return out_padded[:B]


def init_params(key, state_dim=3, input_dim=3, out_dim=3):
    """Deterministic init mirroring torch.nn.Linear default (uniform +-1/sqrt(fan_in)).

    Weights are stored transposed relative to PyTorch (as (in, out)) so the
    kernel computes x @ W + b directly.
    """
    def linear(k, fan_in, fan_out):
        kw, kb = jax.random.split(k)
        bound = 1.0 / jnp.sqrt(float(fan_in))
        wgt = jax.random.uniform(kw, (fan_in, fan_out), jnp.float32, -bound, bound)
        bias = jax.random.uniform(kb, (1, fan_out), jnp.float32, -bound, bound)
        return wgt, bias

    keys = jax.random.split(key, 6)
    ws, bs = linear(keys[0], state_dim, 64)
    wi, bi = linear(keys[1], input_dim, 64)
    w0, b0 = linear(keys[2], 128, 256)
    w1, b1 = linear(keys[3], 256, 128)
    w2, b2 = linear(keys[4], 128, 64)
    w3, b3 = linear(keys[5], 64, out_dim)
    return dict(ws=ws, bs=bs, wi=wi, bi=bi,
                w0=w0, b0=b0, w1=w1, b1=b1,
                w2=w2, b2=b2, w3=w3, b3=b3)


def reference_forward(x_state, x_input, p):
    """Pure-JAX reference with identical semantics (for correctness check)."""
    h_s = jax.nn.relu(x_state @ p["ws"] + p["bs"])
    h_i = jax.nn.relu(x_input @ p["wi"] + p["bi"])
    h = jnp.concatenate([h_s, h_i], axis=1)
    h = jax.nn.relu(h @ p["w0"] + p["b0"])
    h = jax.nn.relu(h @ p["w1"] + p["b1"])
    h = jax.nn.relu(h @ p["w2"] + p["b2"])
    return jnp.tanh(h @ p["w3"] + p["b3"])


if __name__ == "__main__":
    key = jax.random.PRNGKey(0)
    k_params, k_s1, k_i1, k_s2, k_i2 = jax.random.split(key, 5)

    state_dim, input_dim, out_dim = 3, 3, 3
    params = init_params(k_params, state_dim, input_dim, out_dim)

    # Hoisted, one-time weight fusion / casts (perf-review item).
    prep_f32 = prepare_params(params, compute_dtype=jnp.float32)
    prep_bf16 = prepare_params(params)                       # default: bf16 MXU operands

    fwd = jax.jit(rnn_net_2_forward, static_argnames=("batch_tile",))

    # 1) small batch, f32 operands (single tile) -- tight tolerance.
    B1 = 8
    xs1 = jax.random.normal(k_s1, (B1, state_dim), jnp.float32)
    xi1 = jax.random.normal(k_i1, (B1, input_dim), jnp.float32)
    out1 = jax.block_until_ready(fwd(xs1, xi1, prep_f32))
    ref1 = reference_forward(xs1, xi1, params)
    assert out1.shape == (B1, out_dim)
    assert jnp.allclose(out1, ref1, atol=1e-5, rtol=1e-5), "f32 mismatch vs reference"

    # 2) larger batch -> auto-tiled multi-tile grid + row padding, f32, tight tol.
    B2 = 300
    xs2 = jax.random.normal(k_s2, (B2, state_dim), jnp.float32)
    xi2 = jax.random.normal(k_i2, (B2, input_dim), jnp.float32)
    ref2 = reference_forward(xs2, xi2, params)
    out2 = jax.block_until_ready(fwd(xs2, xi2, prep_f32))
    assert out2.shape == (B2, out_dim)
    assert jnp.allclose(out2, ref2, atol=1e-5, rtol=1e-5), "gridded f32 mismatch"

    # 3) odd user-supplied batch_tile is rounded up to a legal 8/16-row multiple.
    out2b = jax.block_until_ready(fwd(xs2, xi2, prep_f32, batch_tile=100))
    assert out2b.shape == (B2, out_dim)
    assert jnp.allclose(out2b, ref2, atol=1e-5, rtol=1e-5), "odd-tile f32 mismatch"

    # 4) default bf16 MXU operands (f32 accumulation / epilogues) -- relaxed tol.
    out3 = jax.block_until_ready(fwd(xs2, xi2, prep_bf16))
    assert out3.shape == (B2, out_dim)
    assert jnp.allclose(out3, ref2, atol=3e-2, rtol=3e-2), "bf16 mismatch vs reference"

    print("KERNEL_OK")
</pallas_src>

<mosaic_0001>
module attributes {stable_mosaic.version = 11 : i64} {
  func.func @rnn_net_2_kernel(%arg0: i32, %arg1: memref<8x6xf32, #tpu.memory_space<vmem>>, %arg2: memref<6x128xf32, #tpu.memory_space<vmem>>, %arg3: memref<1x128xf32, #tpu.memory_space<vmem>>, %arg4: memref<128x256xf32, #tpu.memory_space<vmem>>, %arg5: memref<1x256xf32, #tpu.memory_space<vmem>>, %arg6: memref<256x128xf32, #tpu.memory_space<vmem>>, %arg7: memref<1x128xf32, #tpu.memory_space<vmem>>, %arg8: memref<128x64xf32, #tpu.memory_space<vmem>>, %arg9: memref<1x64xf32, #tpu.memory_space<vmem>>, %arg10: memref<64x3xf32, #tpu.memory_space<vmem>>, %arg11: memref<1x3xf32, #tpu.memory_space<vmem>>, %arg12: memref<8x3xf32, #tpu.memory_space<vmem>>) attributes {dimension_semantics = [#tpu.dimension_semantics<parallel>], iteration_bounds = array<i64: 1>, scalar_prefetch = 0 : i64, scratch_operands = 0 : i64, tpu.core_type = #tpu.core_type<tc>, window_params = [{transform_indices = @transform_0, window_bounds = array<i64: 8, 6>}, {pipeline_mode = #tpu.pipeline_mode<synchronous>, transform_indices = @transform_1, window_bounds = array<i64: 6, 128>}, {pipeline_mode = #tpu.pipeline_mode<synchronous>, transform_indices = @transform_2, window_bounds = array<i64: 1, 128>}, {pipeline_mode = #tpu.pipeline_mode<synchronous>, transform_indices = @transform_3, window_bounds = array<i64: 128, 256>}, {pipeline_mode = #tpu.pipeline_mode<synchronous>, transform_indices = @transform_4, window_bounds = array<i64: 1, 256>}, {pipeline_mode = #tpu.pipeline_mode<synchronous>, transform_indices = @transform_5, window_bounds = array<i64: 256, 128>}, {pipeline_mode = #tpu.pipeline_mode<synchronous>, transform_indices = @transform_6, window_bounds = array<i64: 1, 128>}, {pipeline_mode = #tpu.pipeline_mode<synchronous>, transform_indices = @transform_7, window_bounds = array<i64: 128, 64>}, {pipeline_mode = #tpu.pipeline_mode<synchronous>, transform_indices = @transform_8, window_bounds = array<i64: 1, 64>}, {pipeline_mode = #tpu.pipeline_mode<synchronous>, transform_indices = @transform_9, window_bounds = array<i64: 64, 3>}, {pipeline_mode = #tpu.pipeline_mode<synchronous>, transform_indices = @transform_10, window_bounds = array<i64: 1, 3>}, {transform_indices = @transform_11, window_bounds = array<i64: 8, 3>}]} {
    %c0 = arith.constant 0 : index
    %c0_0 = arith.constant 0 : index
    %0 = vector.load %arg1[%c0, %c0_0] : memref<8x6xf32, #tpu.memory_space<vmem>>, vector<8x6xf32>
    %c0_1 = arith.constant 0 : index
    %c0_2 = arith.constant 0 : index
    %1 = vector.load %arg2[%c0_1, %c0_2] : memref<6x128xf32, #tpu.memory_space<vmem>>, vector<6x128xf32>
    %cst = arith.constant dense<0.000000e+00> : vector<8x128xf32>
    %2 = tpu.matmul %0, %1, %cst {dimension_numbers = #tpu.dot_dimension_numbers<[1], [0], [0], [1], [0, 0, 1, 1], [], []>} : vector<8x6xf32>, vector<6x128xf32>, vector<8x128xf32> -> vector<8x128xf32>
    %c0_3 = arith.constant 0 : index
    %c0_4 = arith.constant 0 : index
    %3 = vector.load %arg3[%c0_3, %c0_4] : memref<1x128xf32, #tpu.memory_space<vmem>>, vector<1x128xf32>
    %4 = vector.broadcast %3 : vector<1x128xf32> to vector<8x128xf32>
    %5 = arith.addf %2, %4 : vector<8x128xf32>
    %cst_5 = arith.constant 0.000000e+00 : f32
    %6 = vector.broadcast %cst_5 : f32 to vector<8x128xf32>
    %7 = arith.maximumf %5, %6 : vector<8x128xf32>
    %c0_6 = arith.constant 0 : index
    %c0_7 = arith.constant 0 : index
    %8 = vector.load %arg4[%c0_6, %c0_7] : memref<128x256xf32, #tpu.memory_space<vmem>>, vector<128x256xf32>
    %cst_8 = arith.constant dense<0.000000e+00> : vector<8x256xf32>
    %9 = tpu.matmul %7, %8, %cst_8 {dimension_numbers = #tpu.dot_dimension_numbers<[1], [0], [0], [1], [0, 0, 1, 1], [], []>} : vector<8x128xf32>, vector<128x256xf32>, vector<8x256xf32> -> vector<8x256xf32>
    %c0_9 = arith.constant 0 : index
    %c0_10 = arith.constant 0 : index
    %10 = vector.load %arg5[%c0_9, %c0_10] : memref<1x256xf32, #tpu.memory_space<vmem>>, vector<1x256xf32>
    %11 = vector.broadcast %10 : vector<1x256xf32> to vector<8x256xf32>
    %12 = arith.addf %9, %11 : vector<8x256xf32>
    %cst_11 = arith.constant 0.000000e+00 : f32
    %13 = vector.broadcast %cst_11 : f32 to vector<8x256xf32>
    %14 = arith.maximumf %12, %13 : vector<8x256xf32>
    %c0_12 = arith.constant 0 : index
    %c0_13 = arith.constant 0 : index
    %15 = vector.load %arg6[%c0_12, %c0_13] : memref<256x128xf32, #tpu.memory_space<vmem>>, vector<256x128xf32>
    %cst_14 = arith.constant dense<0.000000e+00> : vector<8x128xf32>
    %16 = tpu.matmul %14, %15, %cst_14 {dimension_numbers = #tpu.dot_dimension_numbers<[1], [0], [0], [1], [0, 0, 1, 1], [], []>} : vector<8x256xf32>, vector<256x128xf32>, vector<8x128xf32> -> vector<8x128xf32>
    %c0_15 = arith.constant 0 : index
    %c0_16 = arith.constant 0 : index
    %17 = vector.load %arg7[%c0_15, %c0_16] : memref<1x128xf32, #tpu.memory_space<vmem>>, vector<1x128xf32>
    %18 = vector.broadcast %17 : vector<1x128xf32> to vector<8x128xf32>
    %19 = arith.addf %16, %18 : vector<8x128xf32>
    %cst_17 = arith.constant 0.000000e+00 : f32
    %20 = vector.broadcast %cst_17 : f32 to vector<8x128xf32>
    %21 = arith.maximumf %19, %20 : vector<8x128xf32>
    %c0_18 = arith.constant 0 : index
    %c0_19 = arith.constant 0 : index
    %22 = vector.load %arg8[%c0_18, %c0_19] : memref<128x64xf32, #tpu.memory_space<vmem>>, vector<128x64xf32>
    %cst_20 = arith.constant dense<0.000000e+00> : vector<8x64xf32>
    %23 = tpu.matmul %21, %22, %cst_20 {dimension_numbers = #tpu.dot_dimension_numbers<[1], [0], [0], [1], [0, 0, 1, 1], [], []>} : vector<8x128xf32>, vector<128x64xf32>, vector<8x64xf32> -> vector<8x64xf32>
    %c0_21 = arith.constant 0 : index
    %c0_22 = arith.constant 0 : index
    %24 = vector.load %arg9[%c0_21, %c0_22] : memref<1x64xf32, #tpu.memory_space<vmem>>, vector<1x64xf32>
    %25 = vector.broadcast %24 : vector<1x64xf32> to vector<8x64xf32>
    %26 = arith.addf %23, %25 : vector<8x64xf32>
    %cst_23 = arith.constant 0.000000e+00 : f32
    %27 = vector.broadcast %cst_23 : f32 to vector<8x64xf32>
    %28 = arith.maximumf %26, %27 : vector<8x64xf32>
    %c0_24 = arith.constant 0 : index
    %c0_25 = arith.constant 0 : index
    %29 = vector.load %arg10[%c0_24, %c0_25] : memref<64x3xf32, #tpu.memory_space<vmem>>, vector<64x3xf32>
    %cst_26 = arith.constant dense<0.000000e+00> : vector<8x3xf32>
    %30 = tpu.matmul %28, %29, %cst_26 {dimension_numbers = #tpu.dot_dimension_numbers<[1], [0], [0], [1], [0, 0, 1, 1], [], []>} : vector<8x64xf32>, vector<64x3xf32>, vector<8x3xf32> -> vector<8x3xf32>
    %c0_27 = arith.constant 0 : index
    %c0_28 = arith.constant 0 : index
    %31 = vector.load %arg11[%c0_27, %c0_28] : memref<1x3xf32, #tpu.memory_space<vmem>>, vector<1x3xf32>
    %32 = vector.broadcast %31 : vector<1x3xf32> to vector<8x3xf32>
    %33 = arith.addf %30, %32 : vector<8x3xf32>
    %34 = math.tanh %33 : vector<8x3xf32>
    %c0_29 = arith.constant 0 : index
    %c0_30 = arith.constant 0 : index
    %35 = vector.load %arg12[%c0_29, %c0_30] : memref<8x3xf32, #tpu.memory_space<vmem>>, vector<8x3xf32>
    tpu.vector_store %arg12[%c0_29, %c0_30], %34 {strides = array<i32>} : memref<8x3xf32, #tpu.memory_space<vmem>>, vector<8x3xf32>,
    return
  }
  func.func @transform_0(%arg0: i32) -> (i32, i32) {
    %c0_i32 = arith.constant 0 : i32
    %c0_i32_0 = arith.constant 0 : i32
    return %arg0, %c0_i32 : i32, i32
  }
  func.func @transform_1(%arg0: i32) -> (i32, i32) {
    %c0_i32 = arith.constant 0 : i32
    %c0_i32_0 = arith.constant 0 : i32
    %c0_i32_1 = arith.constant 0 : i32
    return %c0_i32, %c0_i32_0 : i32, i32
  }
  func.func @transform_2(%arg0: i32) -> (i32, i32) {
    %c0_i32 = arith.constant 0 : i32
    %c0_i32_0 = arith.constant 0 : i32
    %c0_i32_1 = arith.constant 0 : i32
    return %c0_i32, %c0_i32_0 : i32, i32
  }
  func.func @transform_3(%arg0: i32) -> (i32, i32) {
    %c0_i32 = arith.constant 0 : i32
    %c0_i32_0 = arith.constant 0 : i32
    %c0_i32_1 = arith.constant 0 : i32
    return %c0_i32, %c0_i32_0 : i32, i32
  }
  func.func @transform_4(%arg0: i32) -> (i32, i32) {
    %c0_i32 = arith.constant 0 : i32
    %c0_i32_0 = arith.constant 0 : i32
    %c0_i32_1 = arith.constant 0 : i32
    return %c0_i32, %c0_i32_0 : i32, i32
  }
  func.func @transform_5(%arg0: i32) -> (i32, i32) {
    %c0_i32 = arith.constant 0 : i32
    %c0_i32_0 = arith.constant 0 : i32
    %c0_i32_1 = arith.constant 0 : i32
    return %c0_i32, %c0_i32_0 : i32, i32
  }
  func.func @transform_6(%arg0: i32) -> (i32, i32) {
    %c0_i32 = arith.constant 0 : i32
    %c0_i32_0 = arith.constant 0 : i32
    %c0_i32_1 = arith.constant 0 : i32
    return %c0_i32, %c0_i32_0 : i32, i32
  }
  func.func @transform_7(%arg0: i32) -> (i32, i32) {
    %c0_i32 = arith.constant 0 : i32
    %c0_i32_0 = arith.constant 0 : i32
    %c0_i32_1 = arith.constant 0 : i32
    return %c0_i32, %c0_i32_0 : i32, i32
  }
  func.func @transform_8(%arg0: i32) -> (i32, i32) {
    %c0_i32 = arith.constant 0 : i32
    %c0_i32_0 = arith.constant 0 : i32
    %c0_i32_1 = arith.constant 0 : i32
    return %c0_i32, %c0_i32_0 : i32, i32
  }
  func.func @transform_9(%arg0: i32) -> (i32, i32) {
    %c0_i32 = arith.constant 0 : i32
    %c0_i32_0 = arith.constant 0 : i32
    %c0_i32_1 = arith.constant 0 : i32
    return %c0_i32, %c0_i32_0 : i32, i32
  }
  func.func @transform_10(%arg0: i32) -> (i32, i32) {
    %c0_i32 = arith.constant 0 : i32
    %c0_i32_0 = arith.constant 0 : i32
    %c0_i32_1 = arith.constant 0 : i32
    return %c0_i32, %c0_i32_0 : i32, i32
  }
  func.func @transform_11(%arg0: i32) -> (i32, i32) {
    %c0_i32 = arith.constant 0 : i32
    %c0_i32_0 = arith.constant 0 : i32
    return %arg0, %c0_i32 : i32, i32
  }
}

</mosaic_0001>

<llo_original>
// kernel: rnn_net_2_forward.1
$region0: #{rnn_net_2_forward.1}
  #allocation0 [shape = 'u32[]', space=smem, size = 0x4, offset = 0x4, fixed_abs, tag = 'smem constant byte address 0x4 - core index']
  #allocation1 [shape = 'u32[144,128]{1,0:T(1,128)}', space=vmem, size = 0x12000, scoped, tag = 'internal scratch']
  %s0 = inlined_call_operand.vmem [shape: f32[8,6], index: 0, kind: input, shape index: {}]
  %s1 = inlined_call_operand.vmem [shape: f32[6,128], index: 1, kind: input, shape index: {}]
  %s2 = inlined_call_operand.vmem [shape: f32[1,128], index: 2, kind: input, shape index: {}]
  %s3 = inlined_call_operand.vmem [shape: f32[128,256], index: 3, kind: input, shape index: {}]
  %s4 = inlined_call_operand.vmem [shape: f32[1,256], index: 4, kind: input, shape index: {}]
  %s5 = inlined_call_operand.hbm [shape: f32[256,128], index: 5, kind: input, shape index: {}]
  %s6 = inlined_call_operand.vmem [shape: f32[1,128], index: 6, kind: input, shape index: {}]
  %s7 = inlined_call_operand.vmem [shape: f32[128,64], index: 7, kind: input, shape index: {}]
  %s8 = inlined_call_operand.vmem [shape: f32[1,64], index: 8, kind: input, shape index: {}]
  %s9 = inlined_call_operand.vmem [shape: f32[64,3], index: 9, kind: input, shape index: {}]
  %s10 = inlined_call_operand.vmem [shape: f32[1,3], index: 10, kind: input, shape index: {}]
  %s11 = inlined_call_operand.vmem [shape: f32[8,3], index: 11, kind: output, shape index: {}]
  %s12 = sld [smem:[#allocation0]]
  $region58: #{rnn_net_2_forward.1} parent=0
    _
  %s14 = ssub.s32 1, %s12
  %s15 = scalar_select 0, %s14, %s12
  $region1: #{rnn_net_2_forward.1} parent=0
    #allocation2 [shape = 'u8[131072]{0}', space=vmem, size = 0x20000, scoped, tag = 'input window, operand 5, single buffered']
    #allocation3 [shape = 's32[1]{0}', space=sflag, size = 0x4, scoped, tag = 'scoped memory for rnn_net_2_forward.1']
    %16 = vsyncpa [#allocation3], 0
    // Predicated region
    $region2: #{rnn_net_2_forward.1} parent=1 // pred_check
      _
    $region3: #{rnn_net_2_forward.1} parent=1 // pred_check_branch
      %18 = sbr.rel (0) target = $region5
    $region4: #{rnn_net_2_forward.1} parent=1 // pred_region
      _
    $region5: #{rnn_net_2_forward.1} parent=1 // pred_fallthru
      _
    // Predicated region
    $region6: #{rnn_net_2_forward.1} parent=1 // pred_check
      _
    $region7: #{rnn_net_2_forward.1} parent=1 // pred_check_branch
      %20 = sbr.rel (0) target = $region9
    $region8: #{rnn_net_2_forward.1} parent=1 // pred_region
      _
    $region9: #{rnn_net_2_forward.1} parent=1 // pred_fallthru
      _
    // Predicated region
    $region10: #{rnn_net_2_forward.1} parent=1 // pred_check
      _
    $region11: #{rnn_net_2_forward.1} parent=1 // pred_check_branch
      %22 = sbr.rel (0) target = $region13
    $region12: #{rnn_net_2_forward.1} parent=1 // pred_region
      _
    $region13: #{rnn_net_2_forward.1} parent=1 // pred_fallthru
      _
    // Predicated region
    $region14: #{rnn_net_2_forward.1} parent=1 // pred_check
      _
    $region15: #{rnn_net_2_forward.1} parent=1 // pred_check_branch
      %24 = sbr.rel (0) target = $region17
    $region16: #{rnn_net_2_forward.1} parent=1 // pred_region
      _
    $region17: #{rnn_net_2_forward.1} parent=1 // pred_fallthru
      _
    // Predicated region
    $region18: #{rnn_net_2_forward.1} parent=1 // pred_check
      _
    $region19: #{rnn_net_2_forward.1} parent=1 // pred_check_branch
      %26 = sbr.rel (0) target = $region21
    $region20: #{rnn_net_2_forward.1} parent=1 // pred_region
      _
    $region21: #{rnn_net_2_forward.1} parent=1 // pred_fallthru
      _
    // Predicated region
    $region22: #{rnn_net_2_forward.1} parent=1 // pred_check
      _
    $region23: #{rnn_net_2_forward.1} parent=1 // pred_check_branch
      %28 = sbr.rel (0) target = $region25
    $region24: #{rnn_net_2_forward.1} parent=1 // pred_region
      %s30 = ssub.s32 4096, 4096
      %31 = vsyncadd [#allocation3], %s30
      %s32 = sshll.u32 [#allocation2], 4
      %s33 = int_to_ptr.vmem [resolvable:$true] %s32
      %38 = dma.hbm_to_vmem [thread:$0]  %s5, 4096, %s33, [#allocation3], 128, 128, 8
    $region25: #{rnn_net_2_forward.1} parent=1 // pred_fallthru
      _
    // Predicated region
    $region26: #{rnn_net_2_forward.1} parent=1 // pred_check
      _
    $region27: #{rnn_net_2_forward.1} parent=1 // pred_check_branch
      %40 = sbr.rel (0) target = $region29
    $region28: #{rnn_net_2_forward.1} parent=1 // pred_region
      _
    $region29: #{rnn_net_2_forward.1} parent=1 // pred_fallthru
      _
    // Predicated region
    $region30: #{rnn_net_2_forward.1} parent=1 // pred_check
      _
    $region31: #{rnn_net_2_forward.1} parent=1 // pred_check_branch
      %42 = sbr.rel (0) target = $region33
    $region32: #{rnn_net_2_forward.1} parent=1 // pred_region
      _
    $region33: #{rnn_net_2_forward.1} parent=1 // pred_fallthru
      _
    // Predicated region
    $region34: #{rnn_net_2_forward.1} parent=1 // pred_check
      _
    $region35: #{rnn_net_2_forward.1} parent=1 // pred_check_branch
      %44 = sbr.rel (0) target = $region37
    $region36: #{rnn_net_2_forward.1} parent=1 // pred_region
      _
    $region37: #{rnn_net_2_forward.1} parent=1 // pred_fallthru
      _
    // Predicated region
    $region38: #{rnn_net_2_forward.1} parent=1 // pred_check
      _
    $region39: #{rnn_net_2_forward.1} parent=1 // pred_check_branch
      %46 = sbr.rel (0) target = $region41
    $region40: #{rnn_net_2_forward.1} parent=1 // pred_region
      _
    $region41: #{rnn_net_2_forward.1} parent=1 // pred_fallthru
      _
    // Predicated region
    $region42: #{rnn_net_2_forward.1} parent=1 // pred_check
      _
    $region43: #{rnn_net_2_forward.1} parent=1 // pred_check_branch
      %48 = sbr.rel (0) target = $region45
    $region44: #{rnn_net_2_forward.1} parent=1 // pred_region
      _
    $region45: #{rnn_net_2_forward.1} parent=1 // pred_fallthru
      _
    // Predicated region
    $region46: #{rnn_net_2_forward.1} parent=1 // pred_check
      _
    $region47: #{rnn_net_2_forward.1} parent=1 // pred_check_branch
      %50 = sbr.rel (0) target = $region49
    $region48: #{rnn_net_2_forward.1} parent=1 // pred_region
      %51 = dma.done [#allocation3], 4096
    $region49: #{rnn_net_2_forward.1} parent=1 // pred_fallthru
      _
    %v52 = vld [vmem:[%s0] sm:$0xff]
    %v53 = vld [vmem:[%s1] sm:$0x3f]
    %v54 = vld [vmem:[%s2] sm:$0x1]
    %v56 = vlaneseq
    %v57 = vshrl.u32 %v56, 7
    %v58 = vsub.s32 0, %v57
    %v59 = vrot.slane %v54, %v58
    %vm61 = vcmask 48128
    %v63 = vsel %vm61, %v52, 0
    %vm65 = vcmask 1045504
    %v67 = vsel %vm65, %v53, 0
    %69 = vmatprep.subr.mxu0 0.0
    %70 = vmatpush1.msra.mxu0 %v67
    %71 = vmatprep.subr.mxu0 0.0
    %72 = vmatpush1.msra.mxu0 0.0
    %73 = vmatprep.subr.mxu0 0.0
    %74 = vmatpush1.msra.mxu0 0.0
    %75 = vmatprep.subr.mxu0 0.0
    %76 = vmatpush1.msra.mxu0 0.0
    %77 = vmatprep.subr.mxu0 0.0
    %78 = vmatpush1.msra.mxu0 0.0
    %79 = vmatprep.subr.mxu0 0.0
    %80 = vmatpush1.msra.mxu0 0.0
    %81 = vmatprep.subr.mxu0 0.0
    %82 = vmatpush1.msra.mxu0 0.0
    %83 = vmatprep.subr.mxu0 0.0
    %84 = vmatpush1.msra.mxu0 0.0
    %85 = vmatprep.subr.mxu0 0.0
    %86 = vmatpush1.msra.mxu0 0.0
    %87 = vmatprep.subr.mxu0 0.0
    %88 = vmatpush1.msra.mxu0 0.0
    %89 = vmatprep.subr.mxu0 0.0
    %90 = vmatpush1.msra.mxu0 0.0
    %91 = vmatprep.subr.mxu0 0.0
    %92 = vmatpush1.msra.mxu0 0.0
    %93 = vmatprep.subr.mxu0 0.0
    %94 = vmatpush1.msra.mxu0 0.0
    %95 = vmatprep.subr.mxu0 0.0
    %96 = vmatpush1.msra.mxu0 0.0
    %97 = vmatprep.subr.mxu0 0.0
    %98 = vmatpush1.msra.mxu0 0.0
    %99 = vmatprep.subr.mxu0 0.0
    %100 = vmatpush1.msra.mxu0 0.0
    %101 = vmatprep.subr.mxu0 0.0
    %102 = vmatpush1.msra.mxu0 0.0
    %103 = vmatprep.subr.mxu0 0.0
    %104 = vmatpush1.msra.mxu0 0.0
    %105 = vmatprep.subr.mxu0 0.0
    %106 = vmatpush1.msra.mxu0 0.0
    %107 = vmatprep.subr.mxu0 0.0
    %108 = vmatpush1.msra.mxu0 0.0
    %109 = vmatprep.subr.mxu0 0.0
    %110 = vmatpush1.msra.mxu0 0.0
    %111 = vmatprep.subr.mxu0 0.0
    %112 = vmatpush1.msra.mxu0 0.0
    %113 = vmatprep.subr.mxu0 0.0
    %114 = vmatpush1.msra.mxu0 0.0
    %115 = vmatprep.subr.mxu0 0.0
    %116 = vmatpush1.msra.mxu0 0.0
    %117 = vmatprep.subr.mxu0 0.0
    %118 = vmatpush1.msra.mxu0 0.0
    %119 = vmatprep.subr.mxu0 0.0
    %120 = vmatpush1.msra.mxu0 0.0
    %121 = vmatprep.subr.mxu0 0.0
    %122 = vmatpush1.msra.mxu0 0.0
    %123 = vmatprep.subr.mxu0 0.0
    %124 = vmatpush1.msra.mxu0 0.0
    %125 = vmatprep.subr.mxu0 0.0
    %126 = vmatpush1.msra.mxu0 0.0
    %127 = vmatprep.subr.mxu0 0.0
    %128 = vmatpush1.msra.mxu0 0.0
    %129 = vmatprep.subr.mxu0 0.0
    %130 = vmatpush1.msra.mxu0 0.0
    %131 = vmatprep.subr.mxu0 0.0
    %132 = vmatpush1.msra.mxu0 0.0
    %133 = vmatprep.mubr.f32.mxu0 0.0
    %134 = vmatmul.mubr.f32.gmra.mrb[0].mxu0 %v63
    %v135 = vpop.f32.mrb[0].mxu0
    %v136 = vadd.f32 %v59, %v135
    %v137 = vpop.f32.mrb[0].mxu0
    %138 = vdwg.mxu0
    %v139 = vmax.f32 %v136, 0.0
    %v140 = vld [vmem:[%s3] sm:$0xff]
    %v141 = vld [vmem:[%s3 + $0x8] sm:$0xff]
    %v142 = vld [vmem:[%s3 + $0x10] sm:$0xff]
    %v143 = vld [vmem:[%s3 + $0x18] sm:$0xff]
    %v144 = vld [vmem:[%s3 + $0x20] sm:$0xff]
    %v145 = vld [vmem:[%s3 + $0x28] sm:$0xff]
    %v146 = vld [vmem:[%s3 + $0x30] sm:$0xff]
    %v147 = vld [vmem:[%s3 + $0x38] sm:$0xff]
    %v148 = vld [vmem:[%s3 + $0x40] sm:$0xff]
    %v149 = vld [vmem:[%s3 + $0x48] sm:$0xff]
    %v150 = vld [vmem:[%s3 + $0x50] sm:$0xff]
    %v151 = vld [vmem:[%s3 + $0x58] sm:$0xff]
    %v152 = vld [vmem:[%s3 + $0x60] sm:$0xff]
    %v153 = vld [vmem:[%s3 + $0x68] sm:$0xff]
    %v154 = vld [vmem:[%s3 + $0x70] sm:$0xff]
    %v155 = vld [vmem:[%s3 + $0x78] sm:$0xff]
    %v156 = vld [vmem:[%s3 + $0x80] sm:$0xff]
    %v157 = vld [vmem:[%s3 + $0x88] sm:$0xff]
    %v158 = vld [vmem:[%s3 + $0x90] sm:$0xff]
    %v159 = vld [vmem:[%s3 + $0x98] sm:$0xff]
    %v160 = vld [vmem:[%s3 + $0xa0] sm:$0xff]
    %v161 = vld [vmem:[%s3 + $0xa8] sm:$0xff]
    %v162 = vld [vmem:[%s3 + $0xb0] sm:$0xff]
    %v163 = vld [vmem:[%s3 + $0xb8] sm:$0xff]
    %v164 = vld [vmem:[%s3 + $0xc0] sm:$0xff]
    %v165 = vld [vmem:[%s3 + $0xc8] sm:$0xff]
    %v166 = vld [vmem:[%s3 + $0xd0] sm:$0xff]
    %v167 = vld [vmem:[%s3 + $0xd8] sm:$0xff]
    %v168 = vld [vmem:[%s3 + $0xe0] sm:$0xff]
    %v169 = vld [vmem:[%s3 + $0xe8] sm:$0xff]
    %v170 = vld [vmem:[%s3 + $0xf0] sm:$0xff]
    %v171 = vld [vmem:[%s3 + $0xf8] sm:$0xff]
    %v172 = vld [vmem:[%s4] sm:$0x3]
    %v174 = vlaneseq
    %v175 = vshrl.u32 %v174, 7
    %v176 = vsub.s32 0, %v175
    %v177 = vrot.slane %v172, %v176
    %v178 = vlaneseq
    %v179 = vshrl.u32 %v178, 7
    %v180 = vsub.s32 1, %v179
    %v181 = vrot.slane %v172, %v180
    %184 = vmatprep.subr.mxu0 %v141
    %185 = vmatpush1.msra.mxu0 %v140
    %186 = vmatprep.subr.mxu0 %v143
    %187 = vmatpush1.msra.mxu0 %v142
    %188 = vmatprep.subr.mxu0 %v145
    %189 = vmatpush1.msra.mxu0 %v144
    %190 = vmatprep.subr.mxu0 %v147
    %191 = vmatpush1.msra.mxu0 %v146
    %192 = vmatprep.subr.mxu0 %v149
    %193 = vmatpush1.msra.mxu0 %v148
    %194 = vmatprep.subr.mxu0 %v151
    %195 = vmatpush1.msra.mxu0 %v150
    %196 = vmatprep.subr.mxu0 %v153
    %197 = vmatpush1.msra.mxu0 %v152
    %198 = vmatprep.subr.mxu0 %v155
    %199 = vmatpush1.msra.mxu0 %v154
    %200 = vmatprep.subr.mxu0 %v157
    %201 = vmatpush1.msra.mxu0 %v156
    %202 = vmatprep.subr.mxu0 %v159
    %203 = vmatpush1.msra.mxu0 %v158
    %204 = vmatprep.subr.mxu0 %v161
    %205 = vmatpush1.msra.mxu0 %v160
    %206 = vmatprep.subr.mxu0 %v163
    %207 = vmatpush1.msra.mxu0 %v162
    %208 = vmatprep.subr.mxu0 %v165
    %209 = vmatpush1.msra.mxu0 %v164
    %210 = vmatprep.subr.mxu0 %v167
    %211 = vmatpush1.msra.mxu0 %v166
    %212 = vmatprep.subr.mxu0 %v169
    %213 = vmatpush1.msra.mxu0 %v168
    %214 = vmatprep.subr.mxu0 %v171
    %215 = vmatpush1.msra.mxu0 %v170
    %216 = vmatprep.subr.mxu0 0.0
    %217 = vmatpush1.msra.mxu0 0.0
    %218 = vmatprep.subr.mxu0 0.0
    %219 = vmatpush1.msra.mxu0 0.0
    %220 = vmatprep.subr.mxu0 0.0
    %221 = vmatpush1.msra.mxu0 0.0
    %222 = vmatprep.subr.mxu0 0.0
    %223 = vmatpush1.msra.mxu0 0.0
    %224 = vmatprep.subr.mxu0 0.0
    %225 = vmatpush1.msra.mxu0 0.0
    %226 = vmatprep.subr.mxu0 0.0
    %227 = vmatpush1.msra.mxu0 0.0
    %228 = vmatprep.subr.mxu0 0.0
    %229 = vmatpush1.msra.mxu0 0.0
    %230 = vmatprep.subr.mxu0 0.0
    %231 = vmatpush1.msra.mxu0 0.0
    %232 = vmatprep.subr.mxu0 0.0
    %233 = vmatpush1.msra.mxu0 0.0
    %234 = vmatprep.subr.mxu0 0.0
    %235 = vmatpush1.msra.mxu0 0.0
    %236 = vmatprep.subr.mxu0 0.0
    %237 = vmatpush1.msra.mxu0 0.0
    %238 = vmatprep.subr.mxu0 0.0
    %239 = vmatpush1.msra.mxu0 0.0
    %240 = vmatprep.subr.mxu0 0.0
    %241 = vmatpush1.msra.mxu0 0.0
    %242 = vmatprep.subr.mxu0 0.0
    %243 = vmatpush1.msra.mxu0 0.0
    %244 = vmatprep.subr.mxu0 0.0
    %245 = vmatpush1.msra.mxu0 0.0
    %246 = vmatprep.subr.mxu0 0.0
    %247 = vmatpush1.msra.mxu0 0.0
    %248 = vmatprep.mubr.f32.mxu0 0.0
    %249 = vmatmul.mubr.f32.gmra.mrb[0].mxu0 %v139
    %v250 = vpop.f32.mrb[0].mxu0
    %v251 = vadd.f32 %v177, %v250
    %v252 = vpop.f32.mrb[0].mxu0
    %v253 = vadd.f32 %v181, %v252
    %254 = vdwg.mxu0
    %v255 = vmax.f32 %v251, 0.0
    %v256 = vmax.f32 %v253, 0.0
    %v257 = vld [vmem:[#allocation2] sm:$0xff]
    %v258 = vld [vmem:[#allocation2 + $0x8] sm:$0xff]
    %v259 = vld [vmem:[#allocation2 + $0x10] sm:$0xff]
    %v260 = vld [vmem:[#allocation2 + $0x18] sm:$0xff]
    %v261 = vld [vmem:[#allocation2 + $0x20] sm:$0xff]
    %v262 = vld [vmem:[#allocation2 + $0x28] sm:$0xff]
    %v263 = vld [vmem:[#allocation2 + $0x30] sm:$0xff]
    %v264 = vld [vmem:[#allocation2 + $0x38] sm:$0xff]
    %v265 = vld [vmem:[#allocation2 + $0x40] sm:$0xff]
    %v266 = vld [vmem:[#allocation2 + $0x48] sm:$0xff]
    %v267 = vld [vmem:[#allocation2 + $0x50] sm:$0xff]
    %v268 = vld [vmem:[#allocation2 + $0x58] sm:$0xff]
    %v269 = vld [vmem:[#allocation2 + $0x60] sm:$0xff]
    %v270 = vld [vmem:[#allocation2 + $0x68] sm:$0xff]
    %v271 = vld [vmem:[#allocation2 + $0x70] sm:$0xff]
    %v272 = vld [vmem:[#allocation2 + $0x78] sm:$0xff]
    %v273 = vld [vmem:[#allocation2 + $0x80] sm:$0xff]
    %v274 = vld [vmem:[#allocation2 + $0x88] sm:$0xff]
    %v275 = vld [vmem:[#allocation2 + $0x90] sm:$0xff]
    %v276 = vld [vmem:[#allocation2 + $0x98] sm:$0xff]
    %v277 = vld [vmem:[#allocation2 + $0xa0] sm:$0xff]
    %v278 = vld [vmem:[#allocation2 + $0xa8] sm:$0xff]
    %v279 = vld [vmem:[#allocation2 + $0xb0] sm:$0xff]
    %v280 = vld [vmem:[#allocation2 + $0xb8] sm:$0xff]
    %v281 = vld [vmem:[#allocation2 + $0xc0] sm:$0xff]
    %v282 = vld [vmem:[#allocation2 + $0xc8] sm:$0xff]
    %v283 = vld [vmem:[#allocation2 + $0xd0] sm:$0xff]
    %v284 = vld [vmem:[#allocation2 + $0xd8] sm:$0xff]
    %v285 = vld [vmem:[#allocation2 + $0xe0] sm:$0xff]
    %v286 = vld [vmem:[#allocation2 + $0xe8] sm:$0xff]
    %v287 = vld [vmem:[#allocation2 + $0xf0] sm:$0xff]
    %v288 = vld [vmem:[#allocation2 + $0xf8] sm:$0xff]
    %v289 = vld [vmem:[%s6] sm:$0x1]
    %v291 = vlaneseq
    %v292 = vshrl.u32 %v291, 7
    %v293 = vsub.s32 0, %v292
    %v294 = vrot.slane %v289, %v293
    %296 = vmatprep.subr.mxu0 0.0
    %297 = vmatpush1.msra.mxu0 %v257
    %298 = vmatprep.subr.mxu0 0.0
    %299 = vmatpush1.msra.mxu0 %v258
    %300 = vmatprep.subr.mxu0 0.0
    %301 = vmatpush1.msra.mxu0 %v259
    %302 = vmatprep.subr.mxu0 0.0
    %303 = vmatpush1.msra.mxu0 %v260
    %304 = vmatprep.subr.mxu0 0.0
    %305 = vmatpush1.msra.mxu0 %v261
    %306 = vmatprep.subr.mxu0 0.0
    %307 = vmatpush1.msra.mxu0 %v262
    %308 = vmatprep.subr.mxu0 0.0
    %309 = vmatpush1.msra.mxu0 %v263
    %310 = vmatprep.subr.mxu0 0.0
    %311 = vmatpush1.msra.mxu0 %v264
    %312 = vmatprep.subr.mxu0 0.0
    %313 = vmatpush1.msra.mxu0 %v265
    %314 = vmatprep.subr.mxu0 0.0
    %315 = vmatpush1.msra.mxu0 %v266
    %316 = vmatprep.subr.mxu0 0.0
    %317 = vmatpush1.msra.mxu0 %v267
    %318 = vmatprep.subr.mxu0 0.0
    %319 = vmatpush1.msra.mxu0 %v268
    %320 = vmatprep.subr.mxu0 0.0
    %321 = vmatpush1.msra.mxu0 %v269
    %322 = vmatprep.subr.mxu0 0.0
    %323 = vmatpush1.msra.mxu0 %v270
    %324 = vmatprep.subr.mxu0 0.0
    %325 = vmatpush1.msra.mxu0 %v271
    %326 = vmatprep.subr.mxu0 0.0
    %327 = vmatpush1.msra.mxu0 %v272
    %328 = vmatprep.subr.mxu0 0.0
    %329 = vmatpush1.msra.mxu0 %v273
    %330 = vmatprep.subr.mxu0 0.0
    %331 = vmatpush1.msra.mxu0 %v274
    %332 = vmatprep.subr.mxu0 0.0
    %333 = vmatpush1.msra.mxu0 %v275
    %334 = vmatprep.subr.mxu0 0.0
    %335 = vmatpush1.msra.mxu0 %v276
    %336 = vmatprep.subr.mxu0 0.0
    %337 = vmatpush1.msra.mxu0 %v277
    %338 = vmatprep.subr.mxu0 0.0
    %339 = vmatpush1.msra.mxu0 %v278
    %340 = vmatprep.subr.mxu0 0.0
    %341 = vmatpush1.msra.mxu0 %v279
    %342 = vmatprep.subr.mxu0 0.0
    %343 = vmatpush1.msra.mxu0 %v280
    %344 = vmatprep.subr.mxu0 0.0
    %345 = vmatpush1.msra.mxu0 %v281
    %346 = vmatprep.subr.mxu0 0.0
    %347 = vmatpush1.msra.mxu0 %v282
    %348 = vmatprep.subr.mxu0 0.0
    %349 = vmatpush1.msra.mxu0 %v283
    %350 = vmatprep.subr.mxu0 0.0
    %351 = vmatpush1.msra.mxu0 %v284
    %352 = vmatprep.subr.mxu0 0.0
    %353 = vmatpush1.msra.mxu0 %v285
    %354 = vmatprep.subr.mxu0 0.0
    %355 = vmatpush1.msra.mxu0 %v286
    %356 = vmatprep.subr.mxu0 0.0
    %357 = vmatpush1.msra.mxu0 %v287
    %358 = vmatprep.subr.mxu0 0.0
    %359 = vmatpush1.msra.mxu0 %v288
    %360 = vmatprep.mubr.f32.mxu0 %v256
    %361 = vmatmul.mubr.f32.gmra.mrb[0].mxu0 %v255
    %v362 = vpop.f32.mrb[0].mxu0
    %v363 = vadd.f32 %v294, %v362
    %v364 = vpop.f32.mrb[0].mxu0
    %365 = vdwg.mxu0
    %v366 = vmax.f32 %v363, 0.0
    %v367 = vld [vmem:[%s7] sm:$0xff]
    %v368 = vld [vmem:[%s7 + $0x8] sm:$0xff]
    %v369 = vld [vmem:[%s7 + $0x10] sm:$0xff]
    %v370 = vld [vmem:[%s7 + $0x18] sm:$0xff]
    %v371 = vld [vmem:[%s7 + $0x20] sm:$0xff]
    %v372 = vld [vmem:[%s7 + $0x28] sm:$0xff]
    %v373 = vld [vmem:[%s7 + $0x30] sm:$0xff]
    %v374 = vld [vmem:[%s7 + $0x38] sm:$0xff]
    %v375 = vld [vmem:[%s7 + $0x40] sm:$0xff]
    %v376 = vld [vmem:[%s7 + $0x48] sm:$0xff]
    %v377 = vld [vmem:[%s7 + $0x50] sm:$0xff]
    %v378 = vld [vmem:[%s7 + $0x58] sm:$0xff]
    %v379 = vld [vmem:[%s7 + $0x60] sm:$0xff]
    %v380 = vld [vmem:[%s7 + $0x68] sm:$0xff]
    %v381 = vld [vmem:[%s7 + $0x70] sm:$0xff]
    %v382 = vld [vmem:[%s7 + $0x78] sm:$0xff]
    %v383 = vld [vmem:[%s8] sm:$0x1]
    %v385 = vlaneseq
    %v386 = vshrl.u32 %v385, 7
    %v387 = vsub.s32 0, %v386
    %v388 = vrot.slane %v383, %v387
    %390 = vmatprep.subr.mxu0 0.0
    %391 = vmatpush1.msra.mxu0 %v367
    %392 = vmatprep.subr.mxu0 0.0
    %393 = vmatpush1.msra.mxu0 %v368
    %394 = vmatprep.subr.mxu0 0.0
    %395 = vmatpush1.msra.mxu0 %v369
    %396 = vmatprep.subr.mxu0 0.0
    %397 = vmatpush1.msra.mxu0 %v370
    %398 = vmatprep.subr.mxu0 0.0
    %399 = vmatpush1.msra.mxu0 %v371
    %400 = vmatprep.subr.mxu0 0.0
    %401 = vmatpush1.msra.mxu0 %v372
    %402 = vmatprep.subr.mxu0 0.0
    %403 = vmatpush1.msra.mxu0 %v373
    %404 = vmatprep.subr.mxu0 0.0
    %405 = vmatpush1.msra.mxu0 %v374
    %406 = vmatprep.subr.mxu0 0.0
    %407 = vmatpush1.msra.mxu0 %v375
    %408 = vmatprep.subr.mxu0 0.0
    %409 = vmatpush1.msra.mxu0 %v376
    %410 = vmatprep.subr.mxu0 0.0
    %411 = vmatpush1.msra.mxu0 %v377
    %412 = vmatprep.subr.mxu0 0.0
    %413 = vmatpush1.msra.mxu0 %v378
    %414 = vmatprep.subr.mxu0 0.0
    %415 = vmatpush1.msra.mxu0 %v379
    %416 = vmatprep.subr.mxu0 0.0
    %417 = vmatpush1.msra.mxu0 %v380
    %418 = vmatprep.subr.mxu0 0.0
    %419 = vmatpush1.msra.mxu0 %v381
    %420 = vmatprep.subr.mxu0 0.0
    %421 = vmatpush1.msra.mxu0 %v382
    %422 = vmatprep.subr.mxu0 0.0
    %423 = vmatpush1.msra.mxu0 0.0
    %424 = vmatprep.subr.mxu0 0.0
    %425 = vmatpush1.msra.mxu0 0.0
    %426 = vmatprep.subr.mxu0 0.0
    %427 = vmatpush1.msra.mxu0 0.0
    %428 = vmatprep.subr.mxu0 0.0
    %429 = vmatpush1.msra.mxu0 0.0
    %430 = vmatprep.subr.mxu0 0.0
    %431 = vmatpush1.msra.mxu0 0.0
    %432 = vmatprep.subr.mxu0 0.0
    %433 = vmatpush1.msra.mxu0 0.0
    %434 = vmatprep.subr.mxu0 0.0
    %435 = vmatpush1.msra.mxu0 0.0
    %436 = vmatprep.subr.mxu0 0.0
    %437 = vmatpush1.msra.mxu0 0.0
    %438 = vmatprep.subr.mxu0 0.0
    %439 = vmatpush1.msra.mxu0 0.0
    %440 = vmatprep.subr.mxu0 0.0
    %441 = vmatpush1.msra.mxu0 0.0
    %442 = vmatprep.subr.mxu0 0.0
    %443 = vmatpush1.msra.mxu0 0.0
    %444 = vmatprep.subr.mxu0 0.0
    %445 = vmatpush1.msra.mxu0 0.0
    %446 = vmatprep.subr.mxu0 0.0
    %447 = vmatpush1.msra.mxu0 0.0
    %448 = vmatprep.subr.mxu0 0.0
    %449 = vmatpush1.msra.mxu0 0.0
    %450 = vmatprep.subr.mxu0 0.0
    %451 = vmatpush1.msra.mxu0 0.0
    %452 = vmatprep.subr.mxu0 0.0
    %453 = vmatpush1.msra.mxu0 0.0
    %454 = vmatprep.mubr.f32.mxu0 0.0
    %455 = vmatmul.mubr.f32.gmra.mrb[0].mxu0 %v366
    %v456 = vpop.f32.mrb[0].mxu0
    %v457 = vadd.f32 %v388, %v456
    %v458 = vpop.f32.mrb[0].mxu0
    %459 = vdwg.mxu0
    %v460 = vmax.f32 %v457, 0.0
    %v461 = vld [vmem:[%s9] sm:$0xff]
    %v462 = vld [vmem:[%s9 + $0x8] sm:$0xff]
    %v463 = vld [vmem:[%s9 + $0x10] sm:$0xff]
    %v464 = vld [vmem:[%s9 + $0x18] sm:$0xff]
    %v465 = vld [vmem:[%s9 + $0x20] sm:$0xff]
    %v466 = vld [vmem:[%s9 + $0x28] sm:$0xff]
    %v467 = vld [vmem:[%s9 + $0x30] sm:$0xff]
    %v468 = vld [vmem:[%s9 + $0x38] sm:$0xff]
    %v469 = vld [vmem:[%s10] sm:$0x1]
    %v471 = vlaneseq
    %v472 = vshrl.u32 %v471, 7
    %v473 = vsub.s32 0, %v472
    %v474 = vrot.slane %v469, %v473
    %vm476 = vcmask 523264
    %v478 = vsel %vm476, %v460, 0
    %480 = vmatprep.subr.mxu0 0.0
    %481 = vmatpush1.msra.mxu0 %v461
    %482 = vmatprep.subr.mxu0 0.0
    %483 = vmatpush1.msra.mxu0 %v462
    %484 = vmatprep.subr.mxu0 0.0
    %485 = vmatpush1.msra.mxu0 %v463
    %486 = vmatprep.subr.mxu0 0.0
    %487 = vmatpush1.msra.mxu0 %v464
    %488 = vmatprep.subr.mxu0 0.0
    %489 = vmatpush1.msra.mxu0 %v465
    %490 = vmatprep.subr.mxu0 0.0
    %491 = vmatpush1.msra.mxu0 %v466
    %492 = vmatprep.subr.mxu0 0.0
    %493 = vmatpush1.msra.mxu0 %v467
    %494 = vmatprep.subr.mxu0 0.0
    %495 = vmatpush1.msra.mxu0 %v468
    %496 = vmatprep.subr.mxu0 0.0
    %497 = vmatpush1.msra.mxu0 0.0
    %498 = vmatprep.subr.mxu0 0.0
    %499 = vmatpush1.msra.mxu0 0.0
    %500 = vmatprep.subr.mxu0 0.0
    %501 = vmatpush1.msra.mxu0 0.0
    %502 = vmatprep.subr.mxu0 0.0
    %503 = vmatpush1.msra.mxu0 0.0
    %504 = vmatprep.subr.mxu0 0.0
    %505 = vmatpush1.msra.mxu0 0.0
    %506 = vmatprep.subr.mxu0 0.0
    %507 = vmatpush1.msra.mxu0 0.0
    %508 = vmatprep.subr.mxu0 0.0
    %509 = vmatpush1.msra.mxu0 0.0
    %510 = vmatprep.subr.mxu0 0.0
    %511 = vmatpush1.msra.mxu0 0.0
    %512 = vmatprep.subr.mxu0 0.0
    %513 = vmatpush1.msra.mxu0 0.0
    %514 = vmatprep.subr.mxu0 0.0
    %515 = vmatpush1.msra.mxu0 0.0
    %516 = vmatprep.subr.mxu0 0.0
    %517 = vmatpush1.msra.mxu0 0.0
    %518 = vmatprep.subr.mxu0 0.0
    %519 = vmatpush1.msra.mxu0 0.0
    %520 = vmatprep.subr.mxu0 0.0
    %521 = vmatpush1.msra.mxu0 0.0
    %522 = vmatprep.subr.mxu0 0.0
    %523 = vmatpush1.msra.mxu0 0.0
    %524 = vmatprep.subr.mxu0 0.0
    %525 = vmatpush1.msra.mxu0 0.0
    %526 = vmatprep.subr.mxu0 0.0
    %527 = vmatpush1.msra.mxu0 0.0
    %528 = vmatprep.subr.mxu0 0.0
    %529 = vmatpush1.msra.mxu0 0.0
    %530 = vmatprep.subr.mxu0 0.0
    %531 = vmatpush1.msra.mxu0 0.0
    %532 = vmatprep.subr.mxu0 0.0
    %533 = vmatpush1.msra.mxu0 0.0
    %534 = vmatprep.subr.mxu0 0.0
    %535 = vmatpush1.msra.mxu0 0.0
    %536 = vmatprep.subr.mxu0 0.0
    %537 = vmatpush1.msra.mxu0 0.0
    %538 = vmatprep.subr.mxu0 0.0
    %539 = vmatpush1.msra.mxu0 0.0
    %540 = vmatprep.subr.mxu0 0.0
    %541 = vmatpush1.msra.mxu0 0.0
    %542 = vmatprep.subr.mxu0 0.0
    %543 = vmatpush1.msra.mxu0 0.0
    %544 = vmatprep.mubr.f32.mxu0 0.0
    %545 = vmatmul.mubr.f32.gmra.mrb[0].mxu0 %v478
    %v546 = vpop.f32.mrb[0].mxu0
    %v547 = vadd.f32 %v474, %v546
    %v548 = vpop.f32.mrb[0].mxu0
    %549 = vdwg.mxu0
    %v550 = vtanh.pop %v547
    %vm551 = vcmask 23552
    %552 = vst.msk [vmem:[%s11] sm:$0xff] %vm551, %v550
    // Predicated region
    $region50: #{rnn_net_2_forward.1} parent=1 // pred_check
      _
    $region51: #{rnn_net_2_forward.1} parent=1 // pred_check_branch
      %554 = sbr.rel (0) target = $region53
    $region52: #{rnn_net_2_forward.1} parent=1 // pred_region
      _
    $region53: #{rnn_net_2_forward.1} parent=1 // pred_fallthru
      _
    // Predicated region
    $region54: #{rnn_net_2_forward.1} parent=1 // pred_check
      _
    $region55: #{rnn_net_2_forward.1} parent=1 // pred_check_branch
      %556 = sbr.rel (0) target = $region57
    $region56: #{rnn_net_2_forward.1} parent=1 // pred_region
      _
    $region57: #{rnn_net_2_forward.1} parent=1 // pred_fallthru
      _
    %557 = vsyncpa [#allocation3], 1

</llo_original>
